<compile_context>
chip_gen: v7x
topology: tpu7x:2x2x1
jax: 0.10.0
libtpu: 0.0.40
codegen_flags: <defaults>
</compile_context>

<pallas_src>
import functools

import jax
import jax.numpy as jnp
from jax import lax
from jax.experimental import pallas as pl
from jax.experimental.pallas import tpu as pltpu

_CLASS_CHUNK = 512   # lanes per class-chunk in the single-pass online reduction


def _ce_label_smooth_kernel(
    logits_ref,      # (TB, K) input dtype (f32 / bf16), VMEM
    targets_ref,     # (TB, 1) int32, VMEM
    loss_ref,        # (1, 1, 1) f32 per-core partial sum (resident across inner axis)
    *,
    epsilon,
    num_classes,
    batch,           # true batch size B
    block_b,         # TB
    blocks_per_core, # inner-axis extent
):
    c = pl.program_id(0)   # core-parallel axis
    i = pl.program_id(1)   # batch-block axis (accumulator axis)

    @pl.when(i == 0)
    def _init():
        loss_ref[...] = jnp.zeros_like(loss_ref)

    t = targets_ref[...]                       # (TB, 1) int32
    tb = block_b
    K = num_classes
    on_w = 1.0 - epsilon + epsilon / K         # weight of the target class
    off_w = epsilon / K                        # weight of every other class

    # Single-pass (flash-style) reduction over the class axis in static chunks:
    # carry running max `m`, running sum-exp `s` and running weighted sum
    # `wsum`, so no (TB, K) f32 temporary is materialized in VMEM.
    n_chunks = (K + _CLASS_CHUNK - 1) // _CLASS_CHUNK
    wsum = jnp.zeros((tb, 1), jnp.float32)
    m = None
    s = None
    for ci in range(n_chunks):
        start = ci * _CLASS_CHUNK
        width = min(_CLASS_CHUNK, K - start)
        xc = logits_ref[:, start:start + width].astype(jnp.float32)   # (TB, w)
        ids = start + lax.broadcasted_iota(jnp.int32, xc.shape, 1)
        # Fused weighted reduction: one lane-sum instead of (pick + sum) passes.
        w = jnp.where(ids == t, on_w, off_w)
        wsum = wsum + jnp.sum(w * xc, axis=1, keepdims=True)
        # Online logsumexp pieces.
        m_c = jnp.max(xc, axis=1, keepdims=True)
        if ci == 0:
            m = m_c
            s = jnp.sum(jnp.exp(xc - m_c), axis=1, keepdims=True)
        else:
            m_new = jnp.maximum(m, m_c)
            s = s * jnp.exp(m - m_new) + jnp.sum(
                jnp.exp(xc - m_new), axis=1, keepdims=True)
            m = m_new

    lse = m + jnp.log(s)                       # (TB, 1) logsumexp(x)
    # sum(smoothed) == 1  =>  -sum(smoothed * log_softmax(x)) == lse - sum(w*x)
    per_sample = lse - wsum                    # (TB, 1)

    # Mask logical rows beyond the real batch (last-block overhang and fully
    # out-of-range clamped blocks).  Select, so garbage / inf / NaN in the
    # overhang cannot leak into the sum.
    blk = c * blocks_per_core + i
    row_ids = blk * block_b + lax.broadcasted_iota(jnp.int32, per_sample.shape, 0)
    per_sample = jnp.where(row_ids < batch, per_sample, 0.0)

    loss_ref[...] += jnp.sum(per_sample, axis=0, keepdims=True).reshape(1, 1, 1)


def _choose_block_b(batch, num_classes, itemsize):
    """Batch tile: multiple of 8, logits tile ~6 MiB (double-buffered input +
    per-chunk f32 temporaries stay well under the 48 MiB scoped-VMEM budget
    across v5e / v6e / v7x)."""
    target_bytes = 6 * 1024 * 1024
    tb = target_bytes // max(1, num_classes * itemsize)
    tb = max(8, (int(tb) // 8) * 8)
    tb = min(tb, 4096)
    if tb >= batch:
        return int(batch)       # single full-batch block (block == full dim)
    return int(tb)


def cross_entropy_label_smooth(logits, targets, *, num_classes, epsilon=0.1,
                               block_b=None):
    """Label-smoothed cross entropy, mean over batch (reduction=True).

    logits:  (B, K) float (f32 or bf16 — DMA'd in native dtype, math in f32)
    targets: (B,)   int class labels
    """
    B, K = logits.shape
    assert K == num_classes

    itemsize = jnp.dtype(logits.dtype).itemsize
    if block_b is None:
        block_b = _choose_block_b(B, K, itemsize)
    block_b = int(block_b)
    assert block_b == B or block_b % 8 == 0

    nb = (B + block_b - 1) // block_b          # total batch blocks (no padding)
    npc = (nb + 1) // 2                        # blocks per core
    grid = (2, npc)                            # (core-parallel, accumulate)

    targets_2d = targets.astype(jnp.int32).reshape(B, 1)

    kernel = functools.partial(
        _ce_label_smooth_kernel,
        epsilon=float(epsilon),
        num_classes=int(K),
        batch=int(B),
        block_b=block_b,
        blocks_per_core=int(npc),
    )

    def _blk(c, i):
        # Clamp so a core's extra step (when nb is odd / tiny) stays in-bounds;
        # its rows are masked out by the logical row mask in the kernel.
        return jnp.minimum(c * npc + i, nb - 1)

    partials = pl.pallas_call(
        kernel,
        out_shape=jax.ShapeDtypeStruct((2, 1, 1), jnp.float32),
        grid_spec=pltpu.PrefetchScalarGridSpec(
            num_scalar_prefetch=0,
            grid=grid,
            in_specs=[
                pl.BlockSpec((block_b, K), lambda c, i: (_blk(c, i), 0)),  # logits
                pl.BlockSpec((block_b, 1), lambda c, i: (_blk(c, i), 0)),  # labels
            ],
            out_specs=pl.BlockSpec((1, 1, 1), lambda c, i: (c, 0, 0)),     # per-core sum
        ),
        compiler_params=pltpu.CompilerParams(
            dimension_semantics=("parallel", "arbitrary"),
            vmem_limit_bytes=48 * 1024 * 1024,
        ),
    )(logits, targets_2d)

    return jnp.sum(partials) * (1.0 / B)


def _reference(logits, targets, num_classes, epsilon=0.1):
    """Pure-JAX reference mirroring the PyTorch module (reduction=True)."""
    log_probs = jax.nn.log_softmax(logits.astype(jnp.float32), axis=1)
    onehot = jax.nn.one_hot(targets, num_classes, dtype=jnp.float32)
    smoothed = (1.0 - epsilon) * onehot + epsilon / num_classes
    return jnp.mean(jnp.sum(-smoothed * log_probs, axis=1))


if __name__ == "__main__":
    key = jax.random.PRNGKey(0)
    k1, k2, k3, k4, k5, k6 = jax.random.split(key, 6)
    epsilon = 0.1

    # Case 1: small single-tile problem (matches the module's toy shape).
    B1, K1 = 8, 32
    logits1 = jax.random.normal(k1, (B1, K1), dtype=jnp.float32)
    targets1 = jax.random.randint(k2, (B1,), 0, K1, dtype=jnp.int32)
    loss1 = cross_entropy_label_smooth(
        logits1, targets1, num_classes=K1, epsilon=epsilon)
    loss1 = jax.block_until_ready(loss1)
    ref1 = _reference(logits1, targets1, K1, epsilon)
    assert jnp.allclose(loss1, ref1, atol=1e-4, rtol=1e-5), (loss1, ref1)

    # Case 2: batch not divisible by the tile -> multi-step grid, no padding,
    # overhang handled by the in-kernel row mask.
    B2, K2 = 20, 32
    logits2 = jax.random.normal(k3, (B2, K2), dtype=jnp.float32)
    targets2 = jax.random.randint(k4, (B2,), 0, K2, dtype=jnp.int32)
    loss2 = cross_entropy_label_smooth(
        logits2, targets2, num_classes=K2, epsilon=epsilon, block_b=8)
    loss2 = jax.block_until_ready(loss2)
    ref2 = _reference(logits2, targets2, K2, epsilon)
    assert jnp.allclose(loss2, ref2, atol=1e-4, rtol=1e-5), (loss2, ref2)

    # Case 3: bf16 logits DMA'd natively, f32 math inside the kernel.
    logits_bf16 = logits2.astype(jnp.bfloat16)
    loss3 = cross_entropy_label_smooth(
        logits_bf16, targets2, num_classes=K2, epsilon=epsilon, block_b=8)
    loss3 = jax.block_until_ready(loss3)
    ref3 = _reference(logits_bf16.astype(jnp.float32), targets2, K2, epsilon)
    assert jnp.allclose(loss3, ref3, atol=1e-4, rtol=1e-4), (loss3, ref3)

    # Case 4: K > class chunk (exercises the online K-chunked reduction) with a
    # full-batch block that isn't a multiple of 8 (block == full dim path).
    B4, K4 = 12, 1280
    logits4 = jax.random.normal(k5, (B4, K4), dtype=jnp.float32)
    targets4 = jax.random.randint(k6, (B4,), 0, K4, dtype=jnp.int32)
    loss4 = cross_entropy_label_smooth(
        logits4, targets4, num_classes=K4, epsilon=epsilon)
    loss4 = jax.block_until_ready(loss4)
    ref4 = _reference(logits4, targets4, K4, epsilon)
    assert jnp.allclose(loss4, ref4, atol=1e-4, rtol=1e-4), (loss4, ref4)

    print("KERNEL_OK")
</pallas_src>

<mosaic_0001>
module attributes {stable_mosaic.version = 11 : i64} {
  func.func @_ce_label_smooth_kernel(%arg0: i32, %arg1: i32, %arg2: memref<8x32xf32, #tpu.memory_space<vmem>>, %arg3: memref<8x1xi32, #tpu.memory_space<vmem>>, %arg4: memref<1x1x1xf32, #tpu.memory_space<vmem>>) attributes {dimension_semantics = [#tpu.dimension_semantics<parallel>, #tpu.dimension_semantics<arbitrary>], iteration_bounds = array<i64: 2, 1>, scalar_prefetch = 0 : i64, scratch_operands = 0 : i64, tpu.core_type = #tpu.core_type<tc>, window_params = [{transform_indices = @transform_0, window_bounds = array<i64: 8, 32>}, {transform_indices = @transform_1, window_bounds = array<i64: 8, 1>}, {transform_indices = @transform_2, window_bounds = array<i64: 1, 1, 1>}]} {
    %c0_i32 = arith.constant 0 : i32
    %0 = arith.cmpi eq, %arg1, %c0_i32 : i32
    %1 = arith.extui %0 : i1 to i32
    %c0_i32_0 = arith.constant 0 : i32
    %2 = arith.cmpi ne, %1, %c0_i32_0 : i32
    scf.if %2 {
      %cst_19 = arith.constant 0.000000e+00 : f32
      %44 = vector.broadcast %cst_19 : f32 to vector<1x1x1xf32>
      %c0_20 = arith.constant 0 : index
      %c0_21 = arith.constant 0 : index
      %c0_22 = arith.constant 0 : index
      %45 = vector.load %arg4[%c0_20, %c0_21, %c0_22] : memref<1x1x1xf32, #tpu.memory_space<vmem>>, vector<1x1x1xf32>
      tpu.vector_store %arg4[%c0_20, %c0_21, %c0_22], %44 {strides = array<i32>} : memref<1x1x1xf32, #tpu.memory_space<vmem>>, vector<1x1x1xf32>,
    } else {
    }
    %c0 = arith.constant 0 : index
    %c0_1 = arith.constant 0 : index
    %3 = vector.load %arg3[%c0, %c0_1] : memref<8x1xi32, #tpu.memory_space<vmem>>, vector<8x1xi32>
    %cst = arith.constant 0.000000e+00 : f32
    %4 = vector.broadcast %cst : f32 to vector<8x1xf32>
    %c0_2 = arith.constant 0 : index
    %c0_3 = arith.constant 0 : index
    %5 = vector.load %arg2[%c0_2, %c0_3] : memref<8x32xf32, #tpu.memory_space<vmem>>, vector<8x32xf32>
    %6 = tpu.iota {dimensions = array<i32: 1>} : vector<8x32xi32>
    %c0_i32_4 = arith.constant 0 : i32
    %7 = vector.broadcast %c0_i32_4 : i32 to vector<8x32xi32>
    %8 = arith.addi %7, %6 : vector<8x32xi32>
    %9 = vector.broadcast %3 : vector<8x1xi32> to vector<8x32xi32>
    %10 = arith.cmpi eq, %8, %9 : vector<8x32xi32>
    %cst_5 = arith.constant 0.903124988 : f32
    %cst_6 = arith.constant 3.125000e-03 : f32
    %11 = vector.broadcast %cst_5 : f32 to vector<8x32xf32>
    %12 = vector.broadcast %cst_6 : f32 to vector<8x32xf32>
    %13 = arith.select %10, %11, %12 : vector<8x32xi1>, vector<8x32xf32>
    %14 = arith.mulf %13, %5 : vector<8x32xf32>
    %cst_7 = arith.constant dense<0.000000e+00> : vector<8xf32>
    %15 = vector.multi_reduction <add>, %14, %cst_7 [1] : vector<8x32xf32> to vector<8xf32>
    %16 = vector.shape_cast %15 : vector<8xf32> to vector<8x1xf32>
    %17 = arith.addf %4, %16 : vector<8x1xf32>
    %cst_8 = arith.constant dense<0xFF800000> : vector<8xf32>
    %18 = vector.multi_reduction <maximumf>, %5, %cst_8 [1] : vector<8x32xf32> to vector<8xf32>
    %19 = vector.shape_cast %18 : vector<8xf32> to vector<8x1xf32>
    %20 = vector.broadcast %19 : vector<8x1xf32> to vector<8x32xf32>
    %21 = arith.subf %5, %20 : vector<8x32xf32>
    %22 = math.exp %21 : vector<8x32xf32>
    %cst_9 = arith.constant dense<0.000000e+00> : vector<8xf32>
    %23 = vector.multi_reduction <add>, %22, %cst_9 [1] : vector<8x32xf32> to vector<8xf32>
    %24 = vector.shape_cast %23 : vector<8xf32> to vector<8x1xf32>
    %25 = math.log %24 : vector<8x1xf32>
    %26 = arith.addf %19, %25 : vector<8x1xf32>
    %27 = arith.subf %26, %17 : vector<8x1xf32>
    %c1_i32 = arith.constant 1 : i32
    %28 = arith.muli %arg0, %c1_i32 : i32
    %29 = arith.addi %28, %arg1 : i32
    %c8_i32 = arith.constant 8 : i32
    %30 = arith.muli %29, %c8_i32 : i32
    %31 = tpu.iota {dimensions = array<i32: 0>} : vector<8x1xi32>
    %32 = vector.broadcast %30 : i32 to vector<8x1xi32>
    %33 = arith.addi %32, %31 : vector<8x1xi32>
    %c8_i32_10 = arith.constant 8 : i32
    %34 = vector.broadcast %c8_i32_10 : i32 to vector<8x1xi32>
    %35 = arith.cmpi slt, %33, %34 : vector<8x1xi32>
    %cst_11 = arith.constant 0.000000e+00 : f32
    %36 = vector.broadcast %cst_11 : f32 to vector<8x1xf32>
    %37 = arith.select %35, %27, %36 : vector<8x1xi1>, vector<8x1xf32>
    %c0_12 = arith.constant 0 : index
    %c0_13 = arith.constant 0 : index
    %c0_14 = arith.constant 0 : index
    %38 = vector.load %arg4[%c0_12, %c0_13, %c0_14] : memref<1x1x1xf32, #tpu.memory_space<vmem>>, vector<1x1x1xf32>
    %cst_15 = arith.constant dense<0.000000e+00> : vector<1xf32>
    %39 = vector.multi_reduction <add>, %37, %cst_15 [0] : vector<8x1xf32> to vector<1xf32>
    %40 = vector.shape_cast %39 : vector<1xf32> to vector<1x1xf32>
    %41 = vector.shape_cast %40 : vector<1x1xf32> to vector<1x1x1xf32>
    %42 = arith.addf %38, %41 : vector<1x1x1xf32>
    %c0_16 = arith.constant 0 : index
    %c0_17 = arith.constant 0 : index
    %c0_18 = arith.constant 0 : index
    %43 = vector.load %arg4[%c0_16, %c0_17, %c0_18] : memref<1x1x1xf32, #tpu.memory_space<vmem>>, vector<1x1x1xf32>
    tpu.vector_store %arg4[%c0_16, %c0_17, %c0_18], %42 {strides = array<i32>} : memref<1x1x1xf32, #tpu.memory_space<vmem>>, vector<1x1x1xf32>,
    return
  }
  func.func @transform_0(%arg0: i32, %arg1: i32) -> (i32, i32) {
    %c1_i32 = arith.constant 1 : i32
    %0 = arith.muli %arg0, %c1_i32 : i32
    %1 = arith.addi %0, %arg1 : i32
    %c0_i32 = arith.constant 0 : i32
    %2 = arith.minsi %1, %c0_i32 : i32
    %c0_i32_0 = arith.constant 0 : i32
    %c0_i32_1 = arith.constant 0 : i32
    return %2, %c0_i32_0 : i32, i32
  }
  func.func @transform_1(%arg0: i32, %arg1: i32) -> (i32, i32) {
    %c1_i32 = arith.constant 1 : i32
    %0 = arith.muli %arg0, %c1_i32 : i32
    %1 = arith.addi %0, %arg1 : i32
    %c0_i32 = arith.constant 0 : i32
    %2 = arith.minsi %1, %c0_i32 : i32
    %c0_i32_0 = arith.constant 0 : i32
    %c0_i32_1 = arith.constant 0 : i32
    return %2, %c0_i32_0 : i32, i32
  }
  func.func @transform_2(%arg0: i32, %arg1: i32) -> (i32, i32, i32) {
    %c0_i32 = arith.constant 0 : i32
    %c0_i32_0 = arith.constant 0 : i32
    %c0_i32_1 = arith.constant 0 : i32
    return %arg0, %c0_i32, %c0_i32_0 : i32, i32, i32
  }
}

</mosaic_0001>

<llo_original>
// kernel: tpu_custom_call.1
$region0: #{tpu_custom_call.1}
  #allocation0 [shape = 'u32[]', space=smem, size = 0x4, offset = 0x4, fixed_abs, tag = 'smem constant byte address 0x4 - core index']
  #allocation1 [shape = 'u32[144,128]{1,0:T(1,128)}', space=vmem, size = 0x12000, scoped, tag = 'internal scratch']
  %s0 = inlined_call_operand.vmem [shape: f32[8,32], index: 0, kind: input, shape index: {}]
  %s1 = inlined_call_operand.vmem [shape: s32[8,1], index: 1, kind: input, shape index: {}]
  %s2 = inlined_call_operand.vmem [shape: f32[2,1,1], index: 2, kind: output, shape index: {}]
  %s3 = sld [smem:[#allocation0]]
  $region45: #{tpu_custom_call.1} parent=0
    _
  %s5 = ssub.s32 1, %s3
  %s6 = scalar_select 0, %s5, %s3
  loop: start=0, step=1, limit=4
  $region2: #{tpu_custom_call.1} parent=0 // loop_pre_header
    _
  $region3: #{tpu_custom_call.1} parent=0 // loop_header
    %s8 = sphi 0, %s12
    %p9 = scmp.ge.s32.totalorder %s8, 4
    %s15 = sphi 0, %s27
    %s16 = sphi 0, %s23
    %s17 = sphi 0, %s15
    %s18 = sphi 0, %s16
    %s19 = sphi 0, %s17
    %s20 = sphi 0, %s18
    %s36 = sphi 0, %s38
    %s39 = sphi 0, %s36
    %s40 = sphi 0, %s39
    %s56 = sphi 0, %s40
    %s68 = sphi 0, %s70
    %s71 = sphi 0, %s68
    %s72 = sphi 0, %s71
    %s88 = sphi 0, %s72
    %s94 = sphi 0, %s96
    %s97 = sphi 0, %s94
    %s98 = sphi 0, %s97
    %s114 = sphi 0, %s98
  $region4: #{tpu_custom_call.1} parent=0 // loop_header_branch
    %11 = sbr.rel (%p9) target = $region8
  $region5: #{tpu_custom_call.1} parent=0 // loop_body
    %s13 = ssub.s32 %s8, 1
    %s14 = ssub.s32 %s8, 2
    %s21 = sadd.s32 1, %s16
    %p22 = scmp.ge.s32.totalorder %s21, 1
    %s23 = scalar_select %p22, 0, %s21
    %s24 = sadd.s32 1, %s15
    %s25 = scalar_select %p22, %s24, %s15
    %p26 = scmp.ge.s32.totalorder %s25, 2
    %s27 = scalar_select %p26, 0, %s25
    %s28 = sadd.s32 %s15, %s16
    %p29 = scmp.lt.s32.totalorder %s28, 0
    %s30 = scalar_select %p29, %s28, 0
    %s31 = sadd.s32 %s27, %s23
    %p32 = scmp.lt.s32.totalorder %s31, 0
    %s33 = scalar_select %p32, %s31, 0
    %s34 = ssub.s32 %s30, %s33
    %p35 = scmp.eq.s32.totalorder %s34, 0
    %s37 = sadd.s32 %s36, 1
    %s38 = scalar_select %p35, %s36, %s37
    %p41 = pneg %p35
    %p42 = scmp.eq.s32.totalorder %s8, 1
    %p43 = por %p41, %p42
    %p44 = scmp.ne.s32.totalorder %s36, %s39
    %p45 = scmp.eq.s32.totalorder %s8, 0
    %p46 = por %p44, %p45
    %p47 = scmp.ne.s32.totalorder %s36, %s39
    %p48 = scmp.eq.s32.totalorder %s13, 1
    %p49 = por %p47, %p48
    %p50 = scmp.ne.s32.totalorder %s39, %s40
    %p51 = scmp.eq.s32.totalorder %s13, 0
    %p52 = por %p50, %p51
    %p53 = scmp.ne.s32.totalorder %s39, %s40
    %p54 = scmp.eq.s32.totalorder %s14, 1
    %p55 = por %p53, %p54
    %p57 = scmp.ne.s32.totalorder %s40, %s56
    %p58 = scmp.eq.s32.totalorder %s14, 0
    %p59 = por %p57, %p58
    %s60 = sadd.s32 %s15, %s16
    %p61 = scmp.lt.s32.totalorder %s60, 0
    %s62 = scalar_select %p61, %s60, 0
    %s63 = sadd.s32 %s27, %s23
    %p64 = scmp.lt.s32.totalorder %s63, 0
    %s65 = scalar_select %p64, %s63, 0
    %s66 = ssub.s32 %s62, %s65
    %p67 = scmp.eq.s32.totalorder %s66, 0
    %s69 = sadd.s32 %s68, 1
    %s70 = scalar_select %p67, %s68, %s69
    %p73 = pneg %p67
    %p74 = scmp.eq.s32.totalorder %s8, 1
    %p75 = por %p73, %p74
    %p76 = scmp.ne.s32.totalorder %s68, %s71
    %p77 = scmp.eq.s32.totalorder %s8, 0
    %p78 = por %p76, %p77
    %p79 = scmp.ne.s32.totalorder %s68, %s71
    %p80 = scmp.eq.s32.totalorder %s13, 1
    %p81 = por %p79, %p80
    %p82 = scmp.ne.s32.totalorder %s71, %s72
    %p83 = scmp.eq.s32.totalorder %s13, 0
    %p84 = por %p82, %p83
    %p85 = scmp.ne.s32.totalorder %s71, %s72
    %p86 = scmp.eq.s32.totalorder %s14, 1
    %p87 = por %p85, %p86
    %p89 = scmp.ne.s32.totalorder %s72, %s88
    %p90 = scmp.eq.s32.totalorder %s14, 0
    %p91 = por %p89, %p90
    %s92 = ssub.s32 %s15, %s27
    %p93 = scmp.eq.s32.totalorder %s92, 0
    %s95 = sadd.s32 %s94, 1
    %s96 = scalar_select %p93, %s94, %s95
    %p99 = pneg %p93
    %p100 = scmp.eq.s32.totalorder %s8, 1
    %p101 = por %p99, %p100
    %p102 = scmp.ne.s32.totalorder %s94, %s97
    %p103 = scmp.eq.s32.totalorder %s8, 0
    %p104 = por %p102, %p103
    %p105 = scmp.ne.s32.totalorder %s94, %s97
    %p106 = scmp.eq.s32.totalorder %s13, 1
    %p107 = por %p105, %p106
    %p108 = scmp.ne.s32.totalorder %s97, %s98
    %p109 = scmp.eq.s32.totalorder %s13, 0
    %p110 = por %p108, %p109
    %p111 = scmp.ne.s32.totalorder %s97, %s98
    %p112 = scmp.eq.s32.totalorder %s14, 1
    %p113 = por %p111, %p112
    %p115 = scmp.ne.s32.totalorder %s98, %s114
    %p116 = scmp.eq.s32.totalorder %s14, 0
    %p117 = por %p115, %p116
    %p118 = scmp.le.s32.totalorder 1, %s8
    %p119 = scmp.lt.s32.totalorder %s8, 3
    %p120 = pnand %p118, %p119
    %p121 = pneg %p120
    // Predicated region
    $region9: #{tpu_custom_call.1} parent=5 // pred_check
      _
    $region10: #{tpu_custom_call.1} parent=5 // pred_check_branch
      %123 = sbr.rel (%p120) target = $region12
    $region11: #{tpu_custom_call.1} parent=5 // pred_region
      %s124 = ssub.s32 %s8, 1
    $region12: #{tpu_custom_call.1} parent=5 // pred_fallthru
      _
    %p125 = scmp.lt.s32.totalorder %s8, 2
    // Predicated region
    $region13: #{tpu_custom_call.1} parent=5 // pred_check
      %p126 = pneg %p125
    $region14: #{tpu_custom_call.1} parent=5 // pred_check_branch
      %128 = sbr.rel (%p126) target = $region16
    $region15: #{tpu_custom_call.1} parent=5 // pred_region
      // Predicated region
      $region17: #{tpu_custom_call.1} parent=15 // pred_check
        %p129 = pneg %p46
      $region18: #{tpu_custom_call.1} parent=15 // pred_check_branch
        %131 = sbr.rel (%p129) target = $region20
      $region19: #{tpu_custom_call.1} parent=15 // pred_region
        %s132 = sadd.s32 %s15, %s16
        %p133 = scmp.lt.s32.totalorder %s132, 0
        %s134 = scalar_select %p133, %s132, 0
        %p135 = scmp.lt.s32.totalorder %s134, 0
        %s136 = scalar_select %p135, %s134, 0
        %s137 = smul.addr %s136, 8
        %s138 = scalar_lea.vmem %s0, %s137
        %s139 = sadd.s32 %s15, %s16
        %p140 = scmp.lt.s32.totalorder %s139, 0
        %s141 = scalar_select %p140, %s139, 0
      $region20: #{tpu_custom_call.1} parent=15 // pred_fallthru
        _
      // Predicated region
      $region21: #{tpu_custom_call.1} parent=15 // pred_check
        %p142 = pneg %p78
      $region22: #{tpu_custom_call.1} parent=15 // pred_check_branch
        %144 = sbr.rel (%p142) target = $region24
      $region23: #{tpu_custom_call.1} parent=15 // pred_region
        %s145 = sadd.s32 %s15, %s16
        %p146 = scmp.lt.s32.totalorder %s145, 0
        %s147 = scalar_select %p146, %s145, 0
        %p148 = scmp.lt.s32.totalorder %s147, 0
        %s149 = scalar_select %p148, %s147, 0
        %s150 = smul.addr %s149, 8
        %s151 = scalar_lea.vmem %s1, %s150
        %s152 = sadd.s32 %s15, %s16
        %p153 = scmp.lt.s32.totalorder %s152, 0
        %s154 = scalar_select %p153, %s152, 0
      $region24: #{tpu_custom_call.1} parent=15 // pred_fallthru
        _
    $region16: #{tpu_custom_call.1} parent=5 // pred_fallthru
      _
    %p155 = scmp.le.s32.totalorder 1, %s8
    %p156 = scmp.lt.s32.totalorder %s8, 3
    %p157 = pnand %p155, %p156
    %p158 = pneg %p157
    // Predicated region
    $region25: #{tpu_custom_call.1} parent=5 // pred_check
      _
    $region26: #{tpu_custom_call.1} parent=5 // pred_check_branch
      %160 = sbr.rel (%p157) target = $region28
    $region27: #{tpu_custom_call.1} parent=5 // pred_region
      %s161 = ssub.s32 %s8, 1
      %s162 = sadd.s32 %s17, %s18
      %p163 = scmp.lt.s32.totalorder %s162, 0
      %s164 = scalar_select %p163, %s162, 0
      %p165 = scmp.lt.s32.totalorder %s164, 0
      %s166 = scalar_select %p165, %s164, 0
      %s167 = smul.addr %s166, 8
      %s168 = scalar_lea.vmem %s0, %s167
      %p169 = pneg %p52
      %p170 = pneg %p49
      %s171 = sadd.s32 %s17, %s18
      %p172 = scmp.lt.s32.totalorder %s171, 0
      %s173 = scalar_select %p172, %s171, 0
      %p174 = scmp.lt.s32.totalorder %s173, 0
      %s175 = scalar_select %p174, %s173, 0
      %s176 = smul.addr %s175, 8
      %s177 = scalar_lea.vmem %s1, %s176
      %p178 = pneg %p84
      %p179 = pneg %p81
      %p180 = pneg %p110
      %p181 = pneg %p107
      %p182 = scmp.lt.s32.totalorder %s17, 1
      %s183 = scalar_select %p182, %s17, 1
      %s184 = scalar_lea.vmem %s2, %s183
      %s185 = sadd.s32 %s17, %s18
      %p186 = scmp.lt.s32.totalorder %s185, 0
      %s187 = scalar_select %p186, %s185, 0
      %p188 = scmp.lt.s32.totalorder %s187, 0
      %s189 = scalar_select %p188, %s187, 0
      %s190 = smul.addr %s189, 8
      %s191 = scalar_lea.vmem %s0, %s190
      %s192 = sadd.s32 %s17, %s18
      %p193 = scmp.lt.s32.totalorder %s192, 0
      %s194 = scalar_select %p193, %s192, 0
      %s195 = sadd.s32 %s17, %s18
      %p196 = scmp.lt.s32.totalorder %s195, 0
      %s197 = scalar_select %p196, %s195, 0
      %p198 = scmp.lt.s32.totalorder %s197, 0
      %s199 = scalar_select %p198, %s197, 0
      %s200 = smul.addr %s199, 8
      %s201 = scalar_lea.vmem %s1, %s200
      %s202 = sadd.s32 %s17, %s18
      %p203 = scmp.lt.s32.totalorder %s202, 0
      %s204 = scalar_select %p203, %s202, 0
      %p205 = scmp.lt.s32.totalorder %s17, 1
      %s206 = scalar_select %p205, %s17, 1
      %s207 = scalar_lea.vmem %s2, %s206
      %p208 = scmp.eq.s32.totalorder %s18, 0
      // Predicated region
      $region29: #{tpu_custom_call.1} parent=27 // pred_check
        %p209 = pneg %p208
      $region30: #{tpu_custom_call.1} parent=27 // pred_check_branch
        %211 = sbr.rel (%p209) target = $region32
      $region31: #{tpu_custom_call.1} parent=27 // pred_region
        %vm212 = vcmask 0
        %213 = vst.msk [vmem:[%s207] sm:$0x1] %vm212, 0.0
      $region32: #{tpu_custom_call.1} parent=27 // pred_fallthru
        _
      %v214 = vld [vmem:[%s201] sm:$0xff]
      %v215 = vld [vmem:[%s191] sm:$0xff]
      %v216 = vlaneseq
      %v217 = vand.u32 %v216, 127
      %218 = vset.pattern.permute.xlu0 0
      %219 = vperm.xlu0 %218, %v214
      %v220 = vpop.permute.xlu0 %219
      %vm221 = vcmp.eq.s32.totalorder %v217, %v220
      %v222 = vsel %vm221, 0.903125, 0.003125
      %v223 = vmul.f32 %v222, %v215
      %vm224 = vcmask 261120
      %v225 = vsel %vm224, %v223, 0.0
      %226 = vadd.xlane.f32.xlu0 %v225
      %v227 = vpop.xlane.xlu0 %226
      %v228 = vadd.f32 %v227, 0.0
      %v229 = vsel %vm224, %v215, -inf
      %230 = vmax.xlane.f32.xlu0 %v229
      %v231 = vpop.xlane.xlu0 %230
      %v232 = vsub.f32 %v215, %v231
      %v233 = vmul.f32 %v232, 1.442695
      %v234 = vpow.pop %v233
      %v235 = vsel %vm224, %v234, 0.0
      %236 = vadd.xlane.f32.xlu0 %v235
      %v237 = vpop.xlane.xlu0 %236
      %v238 = vlog2.pop %v237
      %v239 = vmul.f32 %v238, 0.6931472
      %v240 = vadd.f32 %v231, %v239
      %v241 = vsub.f32 %v240, %v228
      %s242 = sadd.s32 %s17, %s18
      %s243 = smul.u32 %s242, 8
      %v244 = vlaneseq
      %v245 = vshrl.u32 %v244, 7
      %v246 = vstv %s243
      %v247 = vadd.s32 %v246, %v245
      %vm248 = vcmp.lt.s32.totalorder %v247, 8
      %v249 = vsel %vm248, %v241, 0.0
      %v250 = vld [vmem:[%s207] sm:$0x1]
      %v251 = vrot.slane %v249, 4
      %v252 = vadd.f32 %v249, %v251
      %v253 = vrot.slane %v252, 2
      %v254 = vadd.f32 %v252, %v253
      %v255 = vrot.slane %v254, 1
      %v256 = vadd.f32 %v254, %v255
      %v257 = vadd.f32 %v250, %v256
      %vm258 = vcmask 0
      %259 = vst.msk [vmem:[%s207] sm:$0x1] %vm258, %v257
      %p260 = scmp.lt.s32.totalorder %s17, 1
      %s261 = scalar_select %p260, %s17, 1
      %s262 = scalar_lea.vmem %s2, %s261
      // Predicated region
      $region33: #{tpu_custom_call.1} parent=27 // pred_check
        %p263 = pneg %p107
      $region34: #{tpu_custom_call.1} parent=27 // pred_check_branch
        %265 = sbr.rel (%p263) target = $region36
      $region35: #{tpu_custom_call.1} parent=27 // pred_region
        _
      $region36: #{tpu_custom_call.1} parent=27 // pred_fallthru
        _
    $region28: #{tpu_custom_call.1} parent=5 // pred_fallthru
      _
    %p266 = scmp.le.s32.totalorder 2, %s8
    // Predicated region
    $region37: #{tpu_custom_call.1} parent=5 // pred_check
      %p267 = pneg %p266
    $region38: #{tpu_custom_call.1} parent=5 // pred_check_branch
      %269 = sbr.rel (%p267) target = $region40
    $region39: #{tpu_custom_call.1} parent=5 // pred_region
      %s270 = ssub.s32 %s8, 2
      // Predicated region
      $region41: #{tpu_custom_call.1} parent=39 // pred_check
        %p271 = pneg %p113
      $region42: #{tpu_custom_call.1} parent=39 // pred_check_branch
        %273 = sbr.rel (%p271) target = $region44
      $region43: #{tpu_custom_call.1} parent=39 // pred_region
        %p274 = scmp.lt.s32.totalorder %s19, 1
        %s275 = scalar_select %p274, %s19, 1
        %s276 = scalar_lea.vmem %s2, %s275
      $region44: #{tpu_custom_call.1} parent=39 // pred_fallthru
        _
    $region40: #{tpu_custom_call.1} parent=5 // pred_fallthru
      _
  $region6: #{tpu_custom_call.1} parent=0 // loop_footer
    %s12 = sadd.s32 1, %s8
  $region7: #{tpu_custom_call.1} parent=0 // loop_footer_branch
    %7 = sbr.rel target = $region3
  $region8: #{tpu_custom_call.1} parent=0 // loop_exit
    _

</llo_original>
